<compile_context>
chip_gen: v6e
topology: v6e:2x2x1
jax: 0.10.0
libtpu: 0.0.40
codegen_flags: <defaults>
</compile_context>

<pallas_src>
import jax
import jax.numpy as jnp
from jax.experimental import pallas as pl
from jax.experimental.pallas import tpu as pltpu


def _round_up(x, m):
    return ((x + m - 1) // m) * m


def _vmem_capacity_bytes():
    """Best-effort query of per-core VMEM capacity (fallback: v7x 64 MiB)."""
    try:
        info = pltpu.get_tpu_info()
        for attr in ("vmem_capacity_bytes", "vmem_bytes", "vmem_size_bytes"):
            v = getattr(info, attr, None)
            if v:
                return int(v)
    except Exception:
        pass
    return 64 * 1024 * 1024


def _select_tiles(na, nc, d_pad, has_mask_stream, block_m, block_k, budget_bytes):
    """(8,128)-aligned (tm, tk) fitting the VMEM budget.

    Arithmetic intensity of the re-streamed contrast operand is ~tm flop/byte,
    so tm is kept as large as possible and tk is shrunk first."""
    tm = min(int(block_m), _round_up(na, 8))
    tk = min(int(block_k), _round_up(nc, 128))

    def usage(tm, tk):
        u = 2 * tm * d_pad * 2            # anchor tile (bf16, double-buffered)
        u += 2 * d_pad * tk * 2           # contrast tile (bf16, double-buffered)
        if has_mask_stream:
            u += 2 * tm * tk * 2          # mask tile (bf16, double-buffered)
        u += 6 * tm * tk * 4              # f32 (tm, tk) epilogue temporaries
        u += 16 * tm * 4                  # row-state scratch + out tile
        return u

    while usage(tm, tk) > budget_bytes and tk > 128:
        tk = max(128, _round_up(tk // 2, 128))
    while usage(tm, tk) > budget_bytes and tm > 8:
        tm = max(8, _round_up(tm // 2, 8))
    return tm, tk


def _make_supcon_kernel(*, tm, tk, nc_valid, nc_padded, loss_scale, use_labels):
    """Build the kernel body (statics baked in via closure)."""
    has_col_pad = nc_padded != nc_valid
    NEG_BIG = -1e30  # finite "minus infinity" (avoids inf-inf NaNs)

    def kernel(a_ref, ct_ref, *rest):
        if use_labels:
            rlab_ref, clab_ref, out_ref, m_sc, l_sc, s_sc, p_sc = rest
        else:
            mask_ref, out_ref, m_sc, l_sc, s_sc, p_sc = rest

        i = pl.program_id(0)            # anchor row tile
        k = pl.program_id(1)            # contrast column tile (reduction axis)
        nk = pl.num_programs(1)

        @pl.when(k == 0)
        def _init():
            m_sc[...] = jnp.full_like(m_sc, NEG_BIG)
            l_sc[...] = jnp.zeros_like(l_sc)
            s_sc[...] = jnp.zeros_like(s_sc)
            p_sc[...] = jnp.zeros_like(p_sc)

        # (tm, tk) logits on the MXU with f32 accumulation; the anchor tile
        # already carries the 1/temperature factor, RHS is K-major [D, tk].
        logits = jax.lax.dot_general(
            a_ref[...], ct_ref[...],
            dimension_numbers=(((1,), (0,)), ((), ())),
            preferred_element_type=jnp.float32)

        if use_labels:
            pos_raw = rlab_ref[...] == clab_ref[...]          # (tm, tk) bool
        else:
            mask_vals = mask_ref[...].astype(jnp.float32)     # (tm, tk) f32

        def update(m_new, e_masked, pos_logits, pos_vals):
            alpha = jnp.exp(m_sc[...] - m_new)
            l_sc[...] = alpha * l_sc[...] + jnp.sum(e_masked, axis=1, keepdims=True)
            s_sc[...] = s_sc[...] + jnp.sum(pos_logits, axis=1, keepdims=True)
            p_sc[...] = p_sc[...] + jnp.sum(pos_vals, axis=1, keepdims=True)
            m_sc[...] = m_new

        # Only tiles touching the self-diagonal (or the padded tail columns on
        # the last k step) need the per-element not_self / col_ok masking ops.
        crosses_diag = jnp.logical_and(i * tm < (k + 1) * tk,
                                       k * tk < (i + 1) * tm)
        if has_col_pad:
            needs_edge = jnp.logical_or(crosses_diag, k == nk - 1)
        else:
            needs_edge = crosses_diag

        @pl.when(needs_edge)
        def _edge_tile():
            row_ids = i * tm + jax.lax.broadcasted_iota(jnp.int32, (tm, 1), 0)
            col_ids = k * tk + jax.lax.broadcasted_iota(jnp.int32, (1, tk), 1)
            not_self = row_ids != col_ids
            if has_col_pad:
                col_ok = col_ids < nc_valid
                lmask = jnp.logical_and(not_self, col_ok)
                # Row max over valid columns; the self column is included,
                # matching the PyTorch logits_max (detach is a no-op in fwd).
                max_src = jnp.where(col_ok, logits, NEG_BIG)
            else:
                lmask = not_self
                max_src = logits
            m_new = jnp.maximum(m_sc[...], jnp.max(max_src, axis=1, keepdims=True))
            e = jnp.where(lmask, jnp.exp(logits - m_new), 0.0)
            if use_labels:
                pos = jnp.logical_and(pos_raw, lmask)
                pos_vals = pos.astype(jnp.float32)
                pos_logits = jnp.where(pos, logits, 0.0)
            else:
                pos_vals = jnp.where(lmask, mask_vals, 0.0)
                pos_logits = pos_vals * logits
            update(m_new, e, pos_logits, pos_vals)

        @pl.when(jnp.logical_not(needs_edge))
        def _interior_tile():
            m_new = jnp.maximum(m_sc[...], jnp.max(logits, axis=1, keepdims=True))
            e = jnp.exp(logits - m_new)
            if use_labels:
                pos_vals = pos_raw.astype(jnp.float32)
                pos_logits = jnp.where(pos_raw, logits, 0.0)
            else:
                pos_vals = mask_vals
                pos_logits = pos_vals * logits
            update(m_new, e, pos_logits, pos_vals)

        @pl.when(k == nk - 1)
        def _finalize():
            # sum(mask*log_prob)/sum(mask) == s/p - (m + log(l)); the divide
            # rides the EUP slot (approx reciprocal).
            mean_lpp = s_sc[...] * pl.reciprocal(p_sc[...], approx=True) \
                       - (m_sc[...] + jnp.log(l_sc[...]))
            out_ref[...] = (loss_scale * mean_lpp).astype(out_ref.dtype)

    return kernel


def supcon_loss(features, labels=None, mask=None, *,
                temperature=0.07, contrast_mode='all', base_temperature=0.07,
                compute_dtype=jnp.bfloat16, block_m=1024, block_k=512):
    """JAX/Pallas equivalent of SupConLoss.forward (returns a scalar loss)."""
    features = jnp.asarray(features)
    if features.ndim < 3:
        raise ValueError('`features` needs to be [bsz, n_views, ...], '
                         'at least 3 dimensions are required')
    bsz, n_views = features.shape[0], features.shape[1]
    features = features.reshape(bsz, n_views, -1)
    dim = features.shape[-1]

    if labels is not None and mask is not None:
        raise ValueError('Cannot define both `labels` and `mask`')

    use_labels = mask is None
    if use_labels:
        if labels is None:
            # eye mask == label-equality with unique labels (SimCLR path)
            labels = jnp.arange(bsz, dtype=jnp.int32)
        else:
            labels = jnp.asarray(labels).reshape(-1)
            if labels.shape[0] != bsz:
                raise ValueError('Num of labels does not match num of features')
            labels = labels.astype(jnp.int32)   # integer class ids assumed
    else:
        mask = jnp.asarray(mask)

    # torch.cat(torch.unbind(features, 1), 0): row = view*bsz + sample
    contrast_feature = jnp.transpose(features, (1, 0, 2)).reshape(n_views * bsz, dim)
    if contrast_mode == 'one':
        anchor_feature = features[:, 0]
        anchor_count = 1
    elif contrast_mode == 'all':
        anchor_feature = contrast_feature
        anchor_count = n_views
    else:
        raise ValueError('Unknown mode: {}'.format(contrast_mode))

    na = anchor_count * bsz
    nc = n_views * bsz

    # Fold 1/temperature into the anchor features once (fuses with the cast),
    # then cast both operands to the MXU compute dtype (bf16 by default).
    inv_t = jnp.float32(1.0 / float(temperature))
    anchor_c = (anchor_feature.astype(jnp.float32) * inv_t).astype(compute_dtype)
    contrast_t = contrast_feature.astype(compute_dtype).T        # (D, Nc), K-major RHS

    # ---- tiling / padding budgeted against queried VMEM capacity ----
    d_pad = _round_up(dim, 128)
    cap = _vmem_capacity_bytes()
    tm, tk = _select_tiles(na, nc, d_pad, has_mask_stream=not use_labels,
                           block_m=block_m, block_k=block_k,
                           budget_bytes=int(cap * 0.55))
    na_pad = _round_up(na, tm)
    nc_pad = _round_up(nc, tk)

    anchor_p = jnp.pad(anchor_c, ((0, na_pad - na), (0, d_pad - dim)))
    contrast_p = jnp.pad(contrast_t, ((0, d_pad - dim), (0, nc_pad - nc)))

    grid = (na_pad // tm, nc_pad // tk)
    loss_scale = -(float(temperature) / float(base_temperature))

    kernel = _make_supcon_kernel(tm=tm, tk=tk, nc_valid=nc, nc_padded=nc_pad,
                                 loss_scale=loss_scale, use_labels=use_labels)

    in_specs = [
        pl.BlockSpec((tm, d_pad), lambda i, k: (i, 0)),   # anchor rows (stationary over k)
        pl.BlockSpec((d_pad, tk), lambda i, k: (0, k)),   # contrast.T columns
    ]
    if use_labels:
        row_lab = jnp.pad(jnp.tile(labels, anchor_count), (0, na_pad - na),
                          constant_values=-1).reshape(na_pad, 1).astype(jnp.int32)
        col_lab = jnp.pad(jnp.tile(labels, n_views), (0, nc_pad - nc),
                          constant_values=-2).reshape(1, nc_pad).astype(jnp.int32)
        inputs = (anchor_p, contrast_p, row_lab, col_lab)
        in_specs += [
            pl.BlockSpec((tm, 1), lambda i, k: (i, 0)),   # row labels
            pl.BlockSpec((1, tk), lambda i, k: (0, k)),   # col labels
        ]
    else:
        # Arbitrary user mask: ship it as bf16.  When the tiles divide bsz the
        # (Na, Nc) repeat is never materialized — the original (bsz, bsz) mask
        # is indexed with a modular index_map instead.
        mask_bf16 = mask.astype(jnp.bfloat16)
        if (bsz % tm == 0) and (bsz % tk == 0):
            br, bc = bsz // tm, bsz // tk
            mask_input = mask_bf16
            mask_spec = pl.BlockSpec(
                (tm, tk), lambda i, k, br=br, bc=bc: (i % br, k % bc))
        else:
            mask_tiled = jnp.tile(mask_bf16, (anchor_count, n_views))   # (Na, Nc)
            mask_input = jnp.pad(mask_tiled, ((0, na_pad - na), (0, nc_pad - nc)))
            mask_spec = pl.BlockSpec((tm, tk), lambda i, k: (i, k))
        inputs = (anchor_p, contrast_p, mask_input)
        in_specs += [mask_spec]

    row_loss = pl.pallas_call(
        kernel,
        out_shape=jax.ShapeDtypeStruct((na_pad, 1), jnp.float32),
        grid_spec=pltpu.PrefetchScalarGridSpec(
            num_scalar_prefetch=0,
            grid=grid,
            in_specs=in_specs,
            out_specs=pl.BlockSpec((tm, 1), lambda i, k: (i, 0)),
            scratch_shapes=[pltpu.VMEM((tm, 1), jnp.float32)] * 4,  # m, l, s, p
        ),
        compiler_params=pltpu.CompilerParams(
            dimension_semantics=("parallel", "arbitrary"),
            vmem_limit_bytes=int(cap * 0.85)),
    )(*inputs)

    # loss.view(anchor_count, batch_size).mean() == mean over the Na anchor rows
    return jnp.mean(row_loss[:na, 0])


def _supcon_loss_ref(features, labels=None, mask=None, *,
                     temperature=0.07, contrast_mode='all', base_temperature=0.07,
                     compute_dtype=jnp.float32):
    """Pure-JAX reference mirroring the PyTorch code (optionally with the same
    bf16 feature rounding as the kernel) for validation."""
    features = jnp.asarray(features)
    bsz, n_views = features.shape[0], features.shape[1]
    features = features.reshape(bsz, n_views, -1)
    if labels is None and mask is None:
        mask = jnp.eye(bsz, dtype=jnp.float32)
    elif labels is not None:
        labels = jnp.asarray(labels).reshape(-1, 1)
        mask = (labels == labels.T).astype(jnp.float32)
    else:
        mask = jnp.asarray(mask, dtype=jnp.float32)
    contrast_feature = jnp.transpose(features, (1, 0, 2)).reshape(n_views * bsz, -1)
    if contrast_mode == 'one':
        anchor_feature, anchor_count = features[:, 0], 1
    else:
        anchor_feature, anchor_count = contrast_feature, n_views
    a = (anchor_feature.astype(jnp.float32) / temperature).astype(compute_dtype)
    c = contrast_feature.astype(compute_dtype)
    adc = jnp.dot(a, c.T, preferred_element_type=jnp.float32)
    logits = adc - jnp.max(adc, axis=1, keepdims=True)
    mask = jnp.tile(mask, (anchor_count, n_views))
    na, nc = mask.shape
    logits_mask = 1.0 - (jnp.arange(na)[:, None] == jnp.arange(nc)[None, :]).astype(jnp.float32)
    mask = mask * logits_mask
    exp_logits = jnp.exp(logits) * logits_mask
    log_prob = logits - jnp.log(jnp.sum(exp_logits, axis=1, keepdims=True))
    mean_log_prob_pos = jnp.sum(mask * log_prob, axis=1) / jnp.sum(mask, axis=1)
    loss = -(temperature / base_temperature) * mean_log_prob_pos
    return jnp.mean(loss.reshape(anchor_count, bsz))


if __name__ == "__main__":
    key = jax.random.PRNGKey(0)
    bsz, n_views, dim = 8, 2, 32
    features = jax.random.normal(key, (bsz, n_views, dim), dtype=jnp.float32)
    features = features / jnp.linalg.norm(features, axis=-1, keepdims=True)
    labels = jnp.array([0, 1, 2, 3, 0, 1, 2, 3], dtype=jnp.int32)

    # --- supervised path (labels -> in-kernel mask) ---
    loss_sup = jax.block_until_ready(supcon_loss(features, labels=labels))
    ref_sup_bf16 = _supcon_loss_ref(features, labels=labels, compute_dtype=jnp.bfloat16)
    ref_sup_f32 = _supcon_loss_ref(features, labels=labels, compute_dtype=jnp.float32)
    assert jnp.allclose(loss_sup, ref_sup_bf16, rtol=1e-2, atol=1e-2), (loss_sup, ref_sup_bf16)
    assert jnp.allclose(loss_sup, ref_sup_f32, rtol=5e-2, atol=5e-2), (loss_sup, ref_sup_f32)

    # --- unsupervised SimCLR path (eye mask) ---
    loss_simclr = jax.block_until_ready(supcon_loss(features))
    ref_simclr = _supcon_loss_ref(features, compute_dtype=jnp.bfloat16)
    assert jnp.allclose(loss_simclr, ref_simclr, rtol=1e-2, atol=1e-2), (loss_simclr, ref_simclr)

    # --- explicit mask path (tiled bf16 mask variant) ---
    mask = (labels[:, None] == labels[None, :]).astype(jnp.float32)
    loss_mask = jax.block_until_ready(supcon_loss(features, mask=mask))
    assert jnp.allclose(loss_mask, loss_sup, rtol=3e-3, atol=3e-3), (loss_mask, loss_sup)

    # --- contrast_mode='one' ---
    loss_one = jax.block_until_ready(
        supcon_loss(features, labels=labels, contrast_mode='one'))
    ref_one = _supcon_loss_ref(features, labels=labels, contrast_mode='one',
                               compute_dtype=jnp.bfloat16)
    assert jnp.allclose(loss_one, ref_one, rtol=1e-2, atol=1e-2), (loss_one, ref_one)

    # --- larger multi-tile case: exercises the interior fast path and the
    #     modular (bsz, bsz) mask indexing (tm, tk divide bsz) ---
    bszL, n_viewsL, dimL = 256, 2, 64
    featL = jax.random.normal(jax.random.PRNGKey(0), (bszL, n_viewsL, dimL),
                              dtype=jnp.float32)
    featL = featL / jnp.linalg.norm(featL, axis=-1, keepdims=True)
    labL = jnp.arange(bszL, dtype=jnp.int32) % 32
    maskL = (labL[:, None] == labL[None, :]).astype(jnp.float32)
    loss_labL = jax.block_until_ready(
        supcon_loss(featL, labels=labL, block_m=128, block_k=128))
    loss_maskL = jax.block_until_ready(
        supcon_loss(featL, mask=maskL, block_m=128, block_k=128))
    refL = _supcon_loss_ref(featL, labels=labL, compute_dtype=jnp.bfloat16)
    assert jnp.allclose(loss_labL, refL, rtol=1e-2, atol=1e-2), (loss_labL, refL)
    assert jnp.allclose(loss_maskL, loss_labL, rtol=3e-3, atol=3e-3), (loss_maskL, loss_labL)

    print("KERNEL_OK")
</pallas_src>

<mosaic_0001>
module attributes {stable_mosaic.version = 11 : i64} {
  func.func @kernel(%arg0: i32, %arg1: i32, %arg2: memref<16x128xbf16, #tpu.memory_space<vmem>>, %arg3: memref<128x128xbf16, #tpu.memory_space<vmem>>, %arg4: memref<16x1xi32, #tpu.memory_space<vmem>>, %arg5: memref<1x128xi32, #tpu.memory_space<vmem>>, %arg6: memref<16x1xf32, #tpu.memory_space<vmem>>, %arg7: memref<16x1xf32, #tpu.memory_space<vmem>>, %arg8: memref<16x1xf32, #tpu.memory_space<vmem>>, %arg9: memref<16x1xf32, #tpu.memory_space<vmem>>, %arg10: memref<16x1xf32, #tpu.memory_space<vmem>>) attributes {dimension_semantics = [#tpu.dimension_semantics<parallel>, #tpu.dimension_semantics<arbitrary>], iteration_bounds = array<i64: 1, 1>, scalar_prefetch = 0 : i64, scratch_operands = 4 : i64, tpu.core_type = #tpu.core_type<tc>, window_params = [{transform_indices = @transform_0, window_bounds = array<i64: 16, 128>}, {transform_indices = @transform_1, window_bounds = array<i64: 128, 128>}, {transform_indices = @transform_2, window_bounds = array<i64: 16, 1>}, {transform_indices = @transform_3, window_bounds = array<i64: 1, 128>}, {transform_indices = @transform_4, window_bounds = array<i64: 16, 1>}]} {
    %c0_i32 = arith.constant 0 : i32
    %0 = arith.cmpi eq, %arg1, %c0_i32 : i32
    %1 = arith.extui %0 : i1 to i32
    %c0_i32_0 = arith.constant 0 : i32
    %2 = arith.cmpi ne, %1, %c0_i32_0 : i32
    scf.if %2 {
      %cst_16 = arith.constant -1.000000e+30 : f32
      %30 = vector.broadcast %cst_16 : f32 to vector<16x1xf32>
      %c0_17 = arith.constant 0 : index
      %c0_18 = arith.constant 0 : index
      %31 = vector.load %arg7[%c0_17, %c0_18] : memref<16x1xf32, #tpu.memory_space<vmem>>, vector<16x1xf32>
      tpu.vector_store %arg7[%c0_17, %c0_18], %30 {strides = array<i32>} : memref<16x1xf32, #tpu.memory_space<vmem>>, vector<16x1xf32>,
      %cst_19 = arith.constant 0.000000e+00 : f32
      %32 = vector.broadcast %cst_19 : f32 to vector<16x1xf32>
      %c0_20 = arith.constant 0 : index
      %c0_21 = arith.constant 0 : index
      %33 = vector.load %arg8[%c0_20, %c0_21] : memref<16x1xf32, #tpu.memory_space<vmem>>, vector<16x1xf32>
      tpu.vector_store %arg8[%c0_20, %c0_21], %32 {strides = array<i32>} : memref<16x1xf32, #tpu.memory_space<vmem>>, vector<16x1xf32>,
      %cst_22 = arith.constant 0.000000e+00 : f32
      %34 = vector.broadcast %cst_22 : f32 to vector<16x1xf32>
      %c0_23 = arith.constant 0 : index
      %c0_24 = arith.constant 0 : index
      %35 = vector.load %arg9[%c0_23, %c0_24] : memref<16x1xf32, #tpu.memory_space<vmem>>, vector<16x1xf32>
      tpu.vector_store %arg9[%c0_23, %c0_24], %34 {strides = array<i32>} : memref<16x1xf32, #tpu.memory_space<vmem>>, vector<16x1xf32>,
      %cst_25 = arith.constant 0.000000e+00 : f32
      %36 = vector.broadcast %cst_25 : f32 to vector<16x1xf32>
      %c0_26 = arith.constant 0 : index
      %c0_27 = arith.constant 0 : index
      %37 = vector.load %arg10[%c0_26, %c0_27] : memref<16x1xf32, #tpu.memory_space<vmem>>, vector<16x1xf32>
      tpu.vector_store %arg10[%c0_26, %c0_27], %36 {strides = array<i32>} : memref<16x1xf32, #tpu.memory_space<vmem>>, vector<16x1xf32>,
    } else {
    }
    %c0 = arith.constant 0 : index
    %c0_1 = arith.constant 0 : index
    %3 = vector.load %arg2[%c0, %c0_1] : memref<16x128xbf16, #tpu.memory_space<vmem>>, vector<16x128xbf16>
    %c0_2 = arith.constant 0 : index
    %c0_3 = arith.constant 0 : index
    %4 = vector.load %arg3[%c0_2, %c0_3] : memref<128x128xbf16, #tpu.memory_space<vmem>>, vector<128x128xbf16>
    %cst = arith.constant dense<0.000000e+00> : vector<16x128xf32>
    %5 = tpu.matmul %3, %4, %cst {dimension_numbers = #tpu.dot_dimension_numbers<[1], [0], [0], [1], [0, 0, 1, 1], [], []>} : vector<16x128xbf16>, vector<128x128xbf16>, vector<16x128xf32> -> vector<16x128xf32>
    %c0_4 = arith.constant 0 : index
    %c0_5 = arith.constant 0 : index
    %6 = vector.load %arg4[%c0_4, %c0_5] : memref<16x1xi32, #tpu.memory_space<vmem>>, vector<16x1xi32>
    %c0_6 = arith.constant 0 : index
    %c0_7 = arith.constant 0 : index
    %7 = vector.load %arg5[%c0_6, %c0_7] : memref<1x128xi32, #tpu.memory_space<vmem>>, vector<1x128xi32>
    %8 = vector.broadcast %6 : vector<16x1xi32> to vector<16x128xi32>
    %9 = vector.broadcast %7 : vector<1x128xi32> to vector<16x128xi32>
    %10 = arith.cmpi eq, %8, %9 : vector<16x128xi32>
    %c16_i32 = arith.constant 16 : i32
    %11 = arith.muli %arg0, %c16_i32 : i32
    %c1_i32 = arith.constant 1 : i32
    %12 = arith.addi %arg1, %c1_i32 : i32
    %c128_i32 = arith.constant 128 : i32
    %13 = arith.muli %12, %c128_i32 : i32
    %14 = arith.cmpi slt, %11, %13 : i32
    %c128_i32_8 = arith.constant 128 : i32
    %15 = arith.muli %arg1, %c128_i32_8 : i32
    %c1_i32_9 = arith.constant 1 : i32
    %16 = arith.addi %arg0, %c1_i32_9 : i32
    %c16_i32_10 = arith.constant 16 : i32
    %17 = arith.muli %16, %c16_i32_10 : i32
    %18 = arith.cmpi slt, %15, %17 : i32
    %19 = arith.andi %14, %18 : i1
    %c0_i32_11 = arith.constant 0 : i32
    %20 = arith.cmpi eq, %arg1, %c0_i32_11 : i32
    %21 = arith.ori %19, %20 : i1
    %22 = arith.extui %21 : i1 to i32
    %c0_i32_12 = arith.constant 0 : i32
    %23 = arith.cmpi ne, %22, %c0_i32_12 : i32
    scf.if %23 {
      %c16_i32_16 = arith.constant 16 : i32
      %30 = arith.muli %arg0, %c16_i32_16 : i32
      %31 = tpu.iota {dimensions = array<i32: 0>} : vector<16x1xi32>
      %32 = vector.broadcast %30 : i32 to vector<16x1xi32>
      %33 = arith.addi %32, %31 : vector<16x1xi32>
      %c128_i32_17 = arith.constant 128 : i32
      %34 = arith.muli %arg1, %c128_i32_17 : i32
      %35 = tpu.iota {dimensions = array<i32: 1>} : vector<1x128xi32>
      %36 = vector.broadcast %34 : i32 to vector<1x128xi32>
      %37 = arith.addi %36, %35 : vector<1x128xi32>
      %38 = vector.broadcast %33 : vector<16x1xi32> to vector<16x128xi32>
      %39 = vector.broadcast %37 : vector<1x128xi32> to vector<16x128xi32>
      %40 = arith.cmpi ne, %38, %39 : vector<16x128xi32>
      %c16_i32_18 = arith.constant 16 : i32
      %41 = vector.broadcast %c16_i32_18 : i32 to vector<1x128xi32>
      %42 = arith.cmpi slt, %37, %41 : vector<1x128xi32>
      %43 = vector.broadcast %42 : vector<1x128xi1> to vector<16x128xi1>
      %44 = arith.andi %40, %43 : vector<16x128xi1>
      %cst_19 = arith.constant -1.000000e+30 : f32
      %45 = vector.shape_cast %42 : vector<1x128xi1> to vector<1x128xi1>
      %46 = vector.broadcast %45 : vector<1x128xi1> to vector<16x128xi1>
      %47 = vector.broadcast %cst_19 : f32 to vector<16x128xf32>
      %48 = arith.select %46, %5, %47 : vector<16x128xi1>, vector<16x128xf32>
      %c0_20 = arith.constant 0 : index
      %c0_21 = arith.constant 0 : index
      %49 = vector.load %arg7[%c0_20, %c0_21] : memref<16x1xf32, #tpu.memory_space<vmem>>, vector<16x1xf32>
      %cst_22 = arith.constant dense<0xFF800000> : vector<16xf32>
      %50 = vector.multi_reduction <maximumf>, %48, %cst_22 [1] : vector<16x128xf32> to vector<16xf32>
      %51 = vector.shape_cast %50 : vector<16xf32> to vector<16x1xf32>
      %52 = arith.maximumf %49, %51 : vector<16x1xf32>
      %53 = vector.broadcast %52 : vector<16x1xf32> to vector<16x128xf32>
      %54 = arith.subf %5, %53 : vector<16x128xf32>
      %55 = math.exp %54 : vector<16x128xf32>
      %cst_23 = arith.constant 0.000000e+00 : f32
      %56 = vector.broadcast %cst_23 : f32 to vector<16x128xf32>
      %57 = arith.select %44, %55, %56 : vector<16x128xi1>, vector<16x128xf32>
      %58 = arith.andi %10, %44 : vector<16x128xi1>
      %59 = arith.extui %58 : vector<16x128xi1> to vector<16x128xi32>
      %60 = arith.sitofp %59 : vector<16x128xi32> to vector<16x128xf32>
      %cst_24 = arith.constant 0.000000e+00 : f32
      %61 = vector.broadcast %cst_24 : f32 to vector<16x128xf32>
      %62 = arith.select %58, %5, %61 : vector<16x128xi1>, vector<16x128xf32>
      %c0_25 = arith.constant 0 : index
      %c0_26 = arith.constant 0 : index
      %63 = vector.load %arg7[%c0_25, %c0_26] : memref<16x1xf32, #tpu.memory_space<vmem>>, vector<16x1xf32>
      %64 = arith.subf %63, %52 : vector<16x1xf32>
      %65 = math.exp %64 : vector<16x1xf32>
      %c0_27 = arith.constant 0 : index
      %c0_28 = arith.constant 0 : index
      %66 = vector.load %arg8[%c0_27, %c0_28] : memref<16x1xf32, #tpu.memory_space<vmem>>, vector<16x1xf32>
      %67 = arith.mulf %65, %66 : vector<16x1xf32>
      %cst_29 = arith.constant dense<0.000000e+00> : vector<16xf32>
      %68 = vector.multi_reduction <add>, %57, %cst_29 [1] : vector<16x128xf32> to vector<16xf32>
      %69 = vector.shape_cast %68 : vector<16xf32> to vector<16x1xf32>
      %70 = arith.addf %67, %69 : vector<16x1xf32>
      %c0_30 = arith.constant 0 : index
      %c0_31 = arith.constant 0 : index
      %71 = vector.load %arg8[%c0_30, %c0_31] : memref<16x1xf32, #tpu.memory_space<vmem>>, vector<16x1xf32>
      tpu.vector_store %arg8[%c0_30, %c0_31], %70 {strides = array<i32>} : memref<16x1xf32, #tpu.memory_space<vmem>>, vector<16x1xf32>,
      %c0_32 = arith.constant 0 : index
      %c0_33 = arith.constant 0 : index
      %72 = vector.load %arg9[%c0_32, %c0_33] : memref<16x1xf32, #tpu.memory_space<vmem>>, vector<16x1xf32>
      %cst_34 = arith.constant dense<0.000000e+00> : vector<16xf32>
      %73 = vector.multi_reduction <add>, %62, %cst_34 [1] : vector<16x128xf32> to vector<16xf32>
      %74 = vector.shape_cast %73 : vector<16xf32> to vector<16x1xf32>
      %75 = arith.addf %72, %74 : vector<16x1xf32>
      %c0_35 = arith.constant 0 : index
      %c0_36 = arith.constant 0 : index
      %76 = vector.load %arg9[%c0_35, %c0_36] : memref<16x1xf32, #tpu.memory_space<vmem>>, vector<16x1xf32>
      tpu.vector_store %arg9[%c0_35, %c0_36], %75 {strides = array<i32>} : memref<16x1xf32, #tpu.memory_space<vmem>>, vector<16x1xf32>,
      %c0_37 = arith.constant 0 : index
      %c0_38 = arith.constant 0 : index
      %77 = vector.load %arg10[%c0_37, %c0_38] : memref<16x1xf32, #tpu.memory_space<vmem>>, vector<16x1xf32>
      %cst_39 = arith.constant dense<0.000000e+00> : vector<16xf32>
      %78 = vector.multi_reduction <add>, %60, %cst_39 [1] : vector<16x128xf32> to vector<16xf32>
      %79 = vector.shape_cast %78 : vector<16xf32> to vector<16x1xf32>
      %80 = arith.addf %77, %79 : vector<16x1xf32>
      %c0_40 = arith.constant 0 : index
      %c0_41 = arith.constant 0 : index
      %81 = vector.load %arg10[%c0_40, %c0_41] : memref<16x1xf32, #tpu.memory_space<vmem>>, vector<16x1xf32>
      tpu.vector_store %arg10[%c0_40, %c0_41], %80 {strides = array<i32>} : memref<16x1xf32, #tpu.memory_space<vmem>>, vector<16x1xf32>,
      %c0_42 = arith.constant 0 : index
      %c0_43 = arith.constant 0 : index
      %82 = vector.load %arg7[%c0_42, %c0_43] : memref<16x1xf32, #tpu.memory_space<vmem>>, vector<16x1xf32>
      tpu.vector_store %arg7[%c0_42, %c0_43], %52 {strides = array<i32>} : memref<16x1xf32, #tpu.memory_space<vmem>>, vector<16x1xf32>,
    } else {
    }
    %true = arith.constant true
    %24 = arith.xori %21, %true : i1
    %25 = arith.extui %24 : i1 to i32
    %c0_i32_13 = arith.constant 0 : i32
    %26 = arith.cmpi ne, %25, %c0_i32_13 : i32
    scf.if %26 {
      %c0_16 = arith.constant 0 : index
      %c0_17 = arith.constant 0 : index
      %30 = vector.load %arg7[%c0_16, %c0_17] : memref<16x1xf32, #tpu.memory_space<vmem>>, vector<16x1xf32>
      %cst_18 = arith.constant dense<0xFF800000> : vector<16xf32>
      %31 = vector.multi_reduction <maximumf>, %5, %cst_18 [1] : vector<16x128xf32> to vector<16xf32>
      %32 = vector.shape_cast %31 : vector<16xf32> to vector<16x1xf32>
      %33 = arith.maximumf %30, %32 : vector<16x1xf32>
      %34 = vector.broadcast %33 : vector<16x1xf32> to vector<16x128xf32>
      %35 = arith.subf %5, %34 : vector<16x128xf32>
      %36 = math.exp %35 : vector<16x128xf32>
      %37 = arith.extui %10 : vector<16x128xi1> to vector<16x128xi32>
      %38 = arith.sitofp %37 : vector<16x128xi32> to vector<16x128xf32>
      %cst_19 = arith.constant 0.000000e+00 : f32
      %39 = vector.broadcast %cst_19 : f32 to vector<16x128xf32>
      %40 = arith.select %10, %5, %39 : vector<16x128xi1>, vector<16x128xf32>
      %c0_20 = arith.constant 0 : index
      %c0_21 = arith.constant 0 : index
      %41 = vector.load %arg7[%c0_20, %c0_21] : memref<16x1xf32, #tpu.memory_space<vmem>>, vector<16x1xf32>
      %42 = arith.subf %41, %33 : vector<16x1xf32>
      %43 = math.exp %42 : vector<16x1xf32>
      %c0_22 = arith.constant 0 : index
      %c0_23 = arith.constant 0 : index
      %44 = vector.load %arg8[%c0_22, %c0_23] : memref<16x1xf32, #tpu.memory_space<vmem>>, vector<16x1xf32>
      %45 = arith.mulf %43, %44 : vector<16x1xf32>
      %cst_24 = arith.constant dense<0.000000e+00> : vector<16xf32>
      %46 = vector.multi_reduction <add>, %36, %cst_24 [1] : vector<16x128xf32> to vector<16xf32>
      %47 = vector.shape_cast %46 : vector<16xf32> to vector<16x1xf32>
      %48 = arith.addf %45, %47 : vector<16x1xf32>
      %c0_25 = arith.constant 0 : index
      %c0_26 = arith.constant 0 : index
      %49 = vector.load %arg8[%c0_25, %c0_26] : memref<16x1xf32, #tpu.memory_space<vmem>>, vector<16x1xf32>
      tpu.vector_store %arg8[%c0_25, %c0_26], %48 {strides = array<i32>} : memref<16x1xf32, #tpu.memory_space<vmem>>, vector<16x1xf32>,
      %c0_27 = arith.constant 0 : index
      %c0_28 = arith.constant 0 : index
      %50 = vector.load %arg9[%c0_27, %c0_28] : memref<16x1xf32, #tpu.memory_space<vmem>>, vector<16x1xf32>
      %cst_29 = arith.constant dense<0.000000e+00> : vector<16xf32>
      %51 = vector.multi_reduction <add>, %40, %cst_29 [1] : vector<16x128xf32> to vector<16xf32>
      %52 = vector.shape_cast %51 : vector<16xf32> to vector<16x1xf32>
      %53 = arith.addf %50, %52 : vector<16x1xf32>
      %c0_30 = arith.constant 0 : index
      %c0_31 = arith.constant 0 : index
      %54 = vector.load %arg9[%c0_30, %c0_31] : memref<16x1xf32, #tpu.memory_space<vmem>>, vector<16x1xf32>
      tpu.vector_store %arg9[%c0_30, %c0_31], %53 {strides = array<i32>} : memref<16x1xf32, #tpu.memory_space<vmem>>, vector<16x1xf32>,
      %c0_32 = arith.constant 0 : index
      %c0_33 = arith.constant 0 : index
      %55 = vector.load %arg10[%c0_32, %c0_33] : memref<16x1xf32, #tpu.memory_space<vmem>>, vector<16x1xf32>
      %cst_34 = arith.constant dense<0.000000e+00> : vector<16xf32>
      %56 = vector.multi_reduction <add>, %38, %cst_34 [1] : vector<16x128xf32> to vector<16xf32>
      %57 = vector.shape_cast %56 : vector<16xf32> to vector<16x1xf32>
      %58 = arith.addf %55, %57 : vector<16x1xf32>
      %c0_35 = arith.constant 0 : index
      %c0_36 = arith.constant 0 : index
      %59 = vector.load %arg10[%c0_35, %c0_36] : memref<16x1xf32, #tpu.memory_space<vmem>>, vector<16x1xf32>
      tpu.vector_store %arg10[%c0_35, %c0_36], %58 {strides = array<i32>} : memref<16x1xf32, #tpu.memory_space<vmem>>, vector<16x1xf32>,
      %c0_37 = arith.constant 0 : index
      %c0_38 = arith.constant 0 : index
      %60 = vector.load %arg7[%c0_37, %c0_38] : memref<16x1xf32, #tpu.memory_space<vmem>>, vector<16x1xf32>
      tpu.vector_store %arg7[%c0_37, %c0_38], %33 {strides = array<i32>} : memref<16x1xf32, #tpu.memory_space<vmem>>, vector<16x1xf32>,
    } else {
    }
    %c0_i32_14 = arith.constant 0 : i32
    %27 = arith.cmpi eq, %arg1, %c0_i32_14 : i32
    %28 = arith.extui %27 : i1 to i32
    %c0_i32_15 = arith.constant 0 : i32
    %29 = arith.cmpi ne, %28, %c0_i32_15 : i32
    scf.if %29 {
      %c0_16 = arith.constant 0 : index
      %c0_17 = arith.constant 0 : index
      %30 = vector.load %arg9[%c0_16, %c0_17] : memref<16x1xf32, #tpu.memory_space<vmem>>, vector<16x1xf32>
      %c0_18 = arith.constant 0 : index
      %c0_19 = arith.constant 0 : index
      %31 = vector.load %arg10[%c0_18, %c0_19] : memref<16x1xf32, #tpu.memory_space<vmem>>, vector<16x1xf32>
      %32 = tpu.reciprocal %31 {approx = true} : vector<16x1xf32> -> vector<16x1xf32>
      %33 = arith.mulf %30, %32 : vector<16x1xf32>
      %c0_20 = arith.constant 0 : index
      %c0_21 = arith.constant 0 : index
      %34 = vector.load %arg7[%c0_20, %c0_21] : memref<16x1xf32, #tpu.memory_space<vmem>>, vector<16x1xf32>
      %c0_22 = arith.constant 0 : index
      %c0_23 = arith.constant 0 : index
      %35 = vector.load %arg8[%c0_22, %c0_23] : memref<16x1xf32, #tpu.memory_space<vmem>>, vector<16x1xf32>
      %36 = math.log %35 : vector<16x1xf32>
      %37 = arith.addf %34, %36 : vector<16x1xf32>
      %38 = arith.subf %33, %37 : vector<16x1xf32>
      %cst_24 = arith.constant -1.000000e+00 : f32
      %39 = vector.broadcast %cst_24 : f32 to vector<16x1xf32>
      %40 = arith.mulf %39, %38 : vector<16x1xf32>
      %c0_25 = arith.constant 0 : index
      %c0_26 = arith.constant 0 : index
      %41 = vector.load %arg6[%c0_25, %c0_26] : memref<16x1xf32, #tpu.memory_space<vmem>>, vector<16x1xf32>
      tpu.vector_store %arg6[%c0_25, %c0_26], %40 {strides = array<i32>} : memref<16x1xf32, #tpu.memory_space<vmem>>, vector<16x1xf32>,
    } else {
    }
    return
  }
  func.func @transform_0(%arg0: i32, %arg1: i32) -> (i32, i32) {
    %c0_i32 = arith.constant 0 : i32
    %c0_i32_0 = arith.constant 0 : i32
    return %arg0, %c0_i32 : i32, i32
  }
  func.func @transform_1(%arg0: i32, %arg1: i32) -> (i32, i32) {
    %c0_i32 = arith.constant 0 : i32
    %c0_i32_0 = arith.constant 0 : i32
    return %c0_i32, %arg1 : i32, i32
  }
  func.func @transform_2(%arg0: i32, %arg1: i32) -> (i32, i32) {
    %c0_i32 = arith.constant 0 : i32
    %c0_i32_0 = arith.constant 0 : i32
    return %arg0, %c0_i32 : i32, i32
  }
  func.func @transform_3(%arg0: i32, %arg1: i32) -> (i32, i32) {
    %c0_i32 = arith.constant 0 : i32
    %c0_i32_0 = arith.constant 0 : i32
    return %c0_i32, %arg1 : i32, i32
  }
  func.func @transform_4(%arg0: i32, %arg1: i32) -> (i32, i32) {
    %c0_i32 = arith.constant 0 : i32
    %c0_i32_0 = arith.constant 0 : i32
    return %arg0, %c0_i32 : i32, i32
  }
}

</mosaic_0001>

<llo_original>
// kernel: tpu_custom_call.1
$region0: #{tpu_custom_call.1}
  #allocation0 [shape = 'u32[]', space=smem, size = 0x4, offset = 0x4, fixed_abs, tag = 'smem constant byte address 0x4 - core index']
  #allocation1 [shape = 'u32[144,128]{1,0:T(1,128)}', space=vmem, size = 0x12000, scoped, tag = 'internal scratch']
  #allocation2 [shape = 'f32[16,1]{1,0:T(8,128)}', space=vmem, size = 0x2000, scoped, tag = 'scratch operand']
  #allocation3 [shape = 'f32[16,1]{1,0:T(8,128)}', space=vmem, size = 0x2000, scoped, tag = 'scratch operand']
  #allocation4 [shape = 'f32[16,1]{1,0:T(8,128)}', space=vmem, size = 0x2000, scoped, tag = 'scratch operand']
  #allocation5 [shape = 'f32[16,1]{1,0:T(8,128)}', space=vmem, size = 0x2000, scoped, tag = 'scratch operand']
  %s0 = inlined_call_operand.vmem [shape: bf16[16,128], index: 0, kind: input, shape index: {}]
  %s1 = inlined_call_operand.hbm [shape: bf16[128,128], index: 1, kind: input, shape index: {}]
  %s2 = inlined_call_operand.vmem [shape: s32[16,1], index: 2, kind: input, shape index: {}]
  %s3 = inlined_call_operand.vmem [shape: s32[1,128], index: 3, kind: input, shape index: {}]
  %s4 = inlined_call_operand.vmem [shape: f32[16,1], index: 4, kind: output, shape index: {}]
  %s5 = sld [smem:[#allocation0]]
  $region46: #{tpu_custom_call.1} parent=0
    _
  %s7 = ssub.s32 1, %s5
  %s8 = scalar_select 0, %s7, %s5
  $region1: #{tpu_custom_call.1} parent=0
    #allocation6 [shape = 'u8[32768]{0}', space=vmem, size = 0x8000, scoped, tag = 'input window, operand 1, single buffered']
    #allocation7 [shape = 's32[1]{0}', space=sflag, size = 0x4, scoped, tag = 'scoped memory for tpu_custom_call.1']
    %9 = vsyncpa [#allocation7], 0
    // Predicated region
    $region2: #{tpu_custom_call.1} parent=1 // pred_check
      _
    $region3: #{tpu_custom_call.1} parent=1 // pred_check_branch
      %11 = sbr.rel (0) target = $region5
    $region4: #{tpu_custom_call.1} parent=1 // pred_region
      _
    $region5: #{tpu_custom_call.1} parent=1 // pred_fallthru
      _
    // Predicated region
    $region6: #{tpu_custom_call.1} parent=1 // pred_check
      _
    $region7: #{tpu_custom_call.1} parent=1 // pred_check_branch
      %13 = sbr.rel (0) target = $region9
    $region8: #{tpu_custom_call.1} parent=1 // pred_region
      %s15 = ssub.s32 1024, 1024
      %16 = vsyncadd [#allocation7], %s15
      %s17 = sshll.u32 [#allocation6], 4
      %s18 = int_to_ptr.vmem [resolvable:$true] %s17
      %23 = dma.hbm_to_vmem [thread:$0]  %s1, 1024, %s18, [#allocation7], 64, 64, 4
    $region9: #{tpu_custom_call.1} parent=1 // pred_fallthru
      _
    // Predicated region
    $region10: #{tpu_custom_call.1} parent=1 // pred_check
      _
    $region11: #{tpu_custom_call.1} parent=1 // pred_check_branch
      %25 = sbr.rel (0) target = $region13
    $region12: #{tpu_custom_call.1} parent=1 // pred_region
      _
    $region13: #{tpu_custom_call.1} parent=1 // pred_fallthru
      _
    // Predicated region
    $region14: #{tpu_custom_call.1} parent=1 // pred_check
      _
    $region15: #{tpu_custom_call.1} parent=1 // pred_check_branch
      %27 = sbr.rel (0) target = $region17
    $region16: #{tpu_custom_call.1} parent=1 // pred_region
      _
    $region17: #{tpu_custom_call.1} parent=1 // pred_fallthru
      _
    // Predicated region
    $region18: #{tpu_custom_call.1} parent=1 // pred_check
      _
    $region19: #{tpu_custom_call.1} parent=1 // pred_check_branch
      %29 = sbr.rel (0) target = $region21
    $region20: #{tpu_custom_call.1} parent=1 // pred_region
      %30 = dma.done [#allocation7], 1024
    $region21: #{tpu_custom_call.1} parent=1 // pred_fallthru
      _
    %p32 = scmp.eq.s32.totalorder 0, 0
    // Predicated region
    $region22: #{tpu_custom_call.1} parent=1 // pred_check
      %p33 = pneg %p32
    $region23: #{tpu_custom_call.1} parent=1 // pred_check_branch
      %35 = sbr.rel (%p33) target = $region25
    $region24: #{tpu_custom_call.1} parent=1 // pred_region
      %vm36 = vcmask 7168
      %37 = vst.msk [vmem:[#allocation2] sm:$0xff] %vm36, -1e+30
      %38 = vst.msk [vmem:[#allocation2 + $0x8] sm:$0xff] %vm36, -1e+30
      %39 = vst.msk [vmem:[#allocation3] sm:$0xff] %vm36, 0.0
      %40 = vst.msk [vmem:[#allocation3 + $0x8] sm:$0xff] %vm36, 0.0
      %41 = vst.msk [vmem:[#allocation4] sm:$0xff] %vm36, 0.0
      %42 = vst.msk [vmem:[#allocation4 + $0x8] sm:$0xff] %vm36, 0.0
      %43 = vst.msk [vmem:[#allocation5] sm:$0xff] %vm36, 0.0
      %44 = vst.msk [vmem:[#allocation5 + $0x8] sm:$0xff] %vm36, 0.0
    $region25: #{tpu_custom_call.1} parent=1 // pred_fallthru
      _
    %v45 = vld [vmem:[%s0] sm:$0xf]
    %v46 = vld [vmem:[%s0 + $0x4] sm:$0xf]
    %v47 = vld [vmem:[#allocation6] sm:$0xf]
    %v48 = vld [vmem:[#allocation6 + $0x4] sm:$0xf]
    %v49 = vld [vmem:[#allocation6 + $0x8] sm:$0xf]
    %v50 = vld [vmem:[#allocation6 + $0xc] sm:$0xf]
    %v51 = vld [vmem:[#allocation6 + $0x10] sm:$0xf]
    %v52 = vld [vmem:[#allocation6 + $0x14] sm:$0xf]
    %v53 = vld [vmem:[#allocation6 + $0x18] sm:$0xf]
    %v54 = vld [vmem:[#allocation6 + $0x1c] sm:$0xf]
    %v55 = vld [vmem:[#allocation6 + $0x20] sm:$0xf]
    %v56 = vld [vmem:[#allocation6 + $0x24] sm:$0xf]
    %v57 = vld [vmem:[#allocation6 + $0x28] sm:$0xf]
    %v58 = vld [vmem:[#allocation6 + $0x2c] sm:$0xf]
    %v59 = vld [vmem:[#allocation6 + $0x30] sm:$0xf]
    %v60 = vld [vmem:[#allocation6 + $0x34] sm:$0xf]
    %v61 = vld [vmem:[#allocation6 + $0x38] sm:$0xf]
    %v62 = vld [vmem:[#allocation6 + $0x3c] sm:$0xf]
    %v65 = vunpack.c.l.b16 %v45
    %v66 = vunpack.c.l.b16 %v46
    %v67 = vpack.c.b16 %v66, %v65
    %v85 = vunpack.c.l.b16 %v47
    %v86 = vunpack.c.l.b16 %v48
    %v87 = vunpack.c.l.b16 %v49
    %v88 = vunpack.c.l.b16 %v50
    %v89 = vunpack.c.l.b16 %v51
    %v90 = vunpack.c.l.b16 %v52
    %v91 = vunpack.c.l.b16 %v53
    %v92 = vunpack.c.l.b16 %v54
    %v93 = vunpack.c.l.b16 %v55
    %v94 = vunpack.c.l.b16 %v56
    %v95 = vunpack.c.l.b16 %v57
    %v96 = vunpack.c.l.b16 %v58
    %v97 = vunpack.c.l.b16 %v59
    %v98 = vunpack.c.l.b16 %v60
    %v99 = vunpack.c.l.b16 %v61
    %v100 = vunpack.c.l.b16 %v62
    %v101 = vpack.c.b16 %v86, %v85
    %v102 = vpack.c.b16 %v88, %v87
    %v103 = vpack.c.b16 %v90, %v89
    %v104 = vpack.c.b16 %v92, %v91
    %v105 = vpack.c.b16 %v94, %v93
    %v106 = vpack.c.b16 %v96, %v95
    %v107 = vpack.c.b16 %v98, %v97
    %v108 = vpack.c.b16 %v100, %v99
    %117 = vmatprep.subr.bf16.mxu0 0
    %118 = vmatpush1.bf16.msra.mxu0 %v108
    %119 = vmatprep.subr.bf16.mxu0 0
    %120 = vmatpush1.bf16.msra.mxu0 %v107
    %121 = vmatprep.subr.bf16.mxu0 0
    %122 = vmatpush1.bf16.msra.mxu0 %v106
    %123 = vmatprep.subr.bf16.mxu0 0
    %124 = vmatpush1.bf16.msra.mxu0 %v105
    %125 = vmatprep.subr.bf16.mxu0 0
    %126 = vmatpush1.bf16.msra.mxu0 %v104
    %127 = vmatprep.subr.bf16.mxu0 0
    %128 = vmatpush1.bf16.msra.mxu0 %v103
    %129 = vmatprep.subr.bf16.mxu0 0
    %130 = vmatpush1.bf16.msra.mxu0 %v102
    %131 = vmatprep.subr.bf16.mxu0 0
    %132 = vmatpush1.bf16.msra.mxu0 %v101
    %133 = vmatprep.subr.bf16.mxu0 0
    %134 = vmatpush2.bf16.msra.mxu0 0
    %135 = vmatprep.subr.bf16.mxu0 0
    %136 = vmatpush2.bf16.msra.mxu0 0
    %137 = vmatprep.subr.bf16.mxu0 0
    %138 = vmatpush2.bf16.msra.mxu0 0
    %139 = vmatprep.subr.bf16.mxu0 0
    %140 = vmatpush2.bf16.msra.mxu0 0
    %141 = vmatprep.subr.bf16.mxu0 0
    %142 = vmatpush2.bf16.msra.mxu0 0
    %143 = vmatprep.subr.bf16.mxu0 0
    %144 = vmatpush2.bf16.msra.mxu0 0
    %145 = vmatprep.subr.bf16.mxu0 0
    %146 = vmatpush2.bf16.msra.mxu0 0
    %147 = vmatprep.subr.bf16.mxu0 0
    %148 = vmatpush2.bf16.msra.mxu0 0
    %149 = vmatprep.mubr.bf16.mxu0 0
    %150 = vmatmul.mubr.bf16.gmra.mxu0 %v67
    %v151 = vpop.f32.mrf.mxu0
    %v152 = vadd.f32 0.0, %v151
    %v153 = vpop.f32.mrf.mxu0
    %v154 = vpop.f32.mrf.mxu0
    %v155 = vadd.f32 0.0, %v154
    %v156 = vpop.f32.mrf.mxu0
    %157 = vdwg.mxu0
    %v158 = vld [vmem:[%s2] sm:$0xff]
    %v159 = vld [vmem:[%s2 + $0x8] sm:$0xff]
    %v160 = vld [vmem:[%s3] sm:$0x1]
    %161 = vset.pattern.permute.xlu0 0
    %162 = vperm.xlu0 %161, %v158
    %v163 = vpop.permute.xlu0 %162
    %164 = vset.pattern.permute.xlu0 0
    %165 = vperm.xlu0 %164, %v159
    %v166 = vpop.permute.xlu0 %165
    %v167 = vlaneseq
    %v168 = vshrl.u32 %v167, 7
    %v169 = vsub.s32 0, %v168
    %v170 = vrot.slane %v160, %v169
    %vm171 = vcmp.eq.s32.totalorder %v163, %v170
    %vm172 = vcmp.eq.s32.totalorder %v166, %v170
    %s173 = smul.u32 0, 16
    %s174 = sadd.s32 0, 1
    %s175 = smul.u32 %s174, 128
    %p176 = scmp.lt.s32.totalorder %s173, %s175
    %s177 = smul.u32 0, 128
    %s178 = sadd.s32 0, 1
    %s179 = smul.u32 %s178, 16
    %p180 = scmp.lt.s32.totalorder %s177, %s179
    %p181 = pnand %p176, %p180
    %p182 = pneg %p181
    %p183 = por %p182, %p32
    // Predicated region
    $region26: #{tpu_custom_call.1} parent=1 // pred_check
      %p184 = pneg %p183
    $region27: #{tpu_custom_call.1} parent=1 // pred_check_branch
      %186 = sbr.rel (%p184) target = $region29
    $region28: #{tpu_custom_call.1} parent=1 // pred_region
      %v187 = vlaneseq
      %v188 = vshrl.u32 %v187, 7
      %v189 = vadd.s32 %v188, 8
      %v190 = vstv %s173
      %v191 = vadd.s32 %v190, %v188
      %v192 = vadd.s32 %v190, %v189
      %v193 = vlaneseq
      %v194 = vand.u32 %v193, 127
      %v195 = vstv %s177
      %v196 = vadd.s32 %v195, %v194
      %vm197 = vcmp.ne.s32.totalorder %v191, %v196
      %vm198 = vcmp.ne.s32.totalorder %v192, %v196
      %vm199 = vcmp.lt.s32.totalorder %v196, 16
      %v200 = vsel %vm199, 1, 0
      %vm201 = vcmp.eq.s32.totalorder %v200, 1
      %vm202 = vmand %vm197, %vm201
      %vm203 = vmand %vm198, %vm201
      %v204 = vsel %vm201, %v152, -1e+30
      %v205 = vsel %vm201, %v155, -1e+30
      %v206 = vld [vmem:[#allocation2] sm:$0xff]
      %v207 = vld [vmem:[#allocation2 + $0x8] sm:$0xff]
      %208 = vmax.xlane.f32.xlu0 %v204
      %v209 = vpop.xlane.xlu0 %208
      %210 = vmax.xlane.f32.xlu0 %v205
      %v211 = vpop.xlane.xlu0 %210
      %v212 = vmax.f32 %v206, %v209
      %v213 = vmax.f32 %v207, %v211
      %215 = vset.pattern.permute.xlu0 0
      %216 = vperm.xlu0 %215, %v212
      %v217 = vpop.permute.xlu0 %216
      %220 = vset.pattern.permute.xlu0 0
      %221 = vperm.xlu0 %220, %v213
      %v222 = vpop.permute.xlu0 %221
      %v224 = vsub.f32 %v152, %v217
      %v225 = vsub.f32 %v155, %v222
      %v226 = vmul.f32 %v224, 1.442695
      %v227 = vpow.pop %v226
      %v228 = vmul.f32 %v225, 1.442695
      %v229 = vpow.pop %v228
      %v230 = vsel %vm202, %v227, 0.0
      %v231 = vsel %vm203, %v229, 0.0
      %vm232 = vmand %vm171, %vm202
      %vm233 = vmand %vm172, %vm203
      %v234 = vsel %vm232, 1, 0
      %v235 = vsel %vm233, 1, 0
      %v236 = vcvt.s32.f32 %v234
      %v237 = vcvt.s32.f32 %v235
      %v238 = vsel %vm232, %v152, 0.0
      %v239 = vsel %vm233, %v155, 0.0
      %v240 = vsub.f32 %v206, %v212
      %v241 = vsub.f32 %v207, %v213
      %v242 = vmul.f32 %v240, 1.442695
      %v243 = vpow.pop %v242
      %v244 = vmul.f32 %v241, 1.442695
      %v245 = vpow.pop %v244
      %v246 = vld [vmem:[#allocation3] sm:$0xff]
      %v247 = vld [vmem:[#allocation3 + $0x8] sm:$0xff]
      %v248 = vmul.f32 %v243, %v246
      %v249 = vmul.f32 %v245, %v247
      %250 = vadd.xlane.f32.xlu0 %v230
      %v251 = vpop.xlane.xlu0 %250
      %252 = vadd.xlane.f32.xlu0 %v231
      %v253 = vpop.xlane.xlu0 %252
      %v254 = vadd.f32 %v248, %v251
      %v255 = vadd.f32 %v249, %v253
      %vm256 = vcmask 7168
      %257 = vst.msk [vmem:[#allocation3] sm:$0xff] %vm256, %v254
      %258 = vst.msk [vmem:[#allocation3 + $0x8] sm:$0xff] %vm256, %v255
      %v259 = vld [vmem:[#allocation4] sm:$0xff]
      %v260 = vld [vmem:[#allocation4 + $0x8] sm:$0xff]
      %261 = vadd.xlane.f32.xlu0 %v238
      %v262 = vpop.xlane.xlu0 %261
      %263 = vadd.xlane.f32.xlu0 %v239
      %v264 = vpop.xlane.xlu0 %263
      %v265 = vadd.f32 %v259, %v262
      %v266 = vadd.f32 %v260, %v264
      %267 = vst.msk [vmem:[#allocation4] sm:$0xff] %vm256, %v265
      %268 = vst.msk [vmem:[#allocation4 + $0x8] sm:$0xff] %vm256, %v266
      %v269 = vld [vmem:[#allocation5] sm:$0xff]
      %v270 = vld [vmem:[#allocation5 + $0x8] sm:$0xff]
      %271 = vadd.xlane.f32.xlu0 %v236
      %v272 = vpop.xlane.xlu0 %271
      %273 = vadd.xlane.f32.xlu0 %v237
      %v274 = vpop.xlane.xlu0 %273
      %v275 = vadd.f32 %v269, %v272
      %v276 = vadd.f32 %v270, %v274
      %277 = vst.msk [vmem:[#allocation5] sm:$0xff] %vm256, %v275
      %278 = vst.msk [vmem:[#allocation5 + $0x8] sm:$0xff] %vm256, %v276
      %279 = vst.msk [vmem:[#allocation2] sm:$0xff] %vm256, %v212
      %280 = vst.msk [vmem:[#allocation2 + $0x8] sm:$0xff] %vm256, %v213
    $region29: #{tpu_custom_call.1} parent=1 // pred_fallthru
      _
    %p281 = pneg %p183
    // Predicated region
    $region30: #{tpu_custom_call.1} parent=1 // pred_check
      _
    $region31: #{tpu_custom_call.1} parent=1 // pred_check_branch
      %283 = sbr.rel (%p183) target = $region33
    $region32: #{tpu_custom_call.1} parent=1 // pred_region
      %v284 = vld [vmem:[#allocation2] sm:$0xff]
      %v285 = vld [vmem:[#allocation2 + $0x8] sm:$0xff]
      %286 = vmax.xlane.f32.xlu0 %v152
      %v287 = vpop.xlane.xlu0 %286
      %288 = vmax.xlane.f32.xlu0 %v155
      %v289 = vpop.xlane.xlu0 %288
      %v290 = vmax.f32 %v284, %v287
      %v291 = vmax.f32 %v285, %v289
      %293 = vset.pattern.permute.xlu0 0
      %294 = vperm.xlu0 %293, %v290
      %v295 = vpop.permute.xlu0 %294
      %298 = vset.pattern.permute.xlu0 0
      %299 = vperm.xlu0 %298, %v291
      %v300 = vpop.permute.xlu0 %299
      %v302 = vsub.f32 %v152, %v295
      %v303 = vsub.f32 %v155, %v300
      %v304 = vmul.f32 %v302, 1.442695
      %v305 = vpow.pop %v304
      %v306 = vmul.f32 %v303, 1.442695
      %v307 = vpow.pop %v306
      %v308 = vsel %vm171, 1, 0
      %v309 = vsel %vm172, 1, 0
      %v310 = vcvt.s32.f32 %v308
      %v311 = vcvt.s32.f32 %v309
      %v312 = vsel %vm171, %v152, 0.0
      %v313 = vsel %vm172, %v155, 0.0
      %v314 = vsub.f32 %v284, %v290
      %v315 = vsub.f32 %v285, %v291
      %v316 = vmul.f32 %v314, 1.442695
      %v317 = vpow.pop %v316
      %v318 = vmul.f32 %v315, 1.442695
      %v319 = vpow.pop %v318
      %v320 = vld [vmem:[#allocation3] sm:$0xff]
      %v321 = vld [vmem:[#allocation3 + $0x8] sm:$0xff]
      %v322 = vmul.f32 %v317, %v320
      %v323 = vmul.f32 %v319, %v321
      %324 = vadd.xlane.f32.xlu0 %v305
      %v325 = vpop.xlane.xlu0 %324
      %326 = vadd.xlane.f32.xlu0 %v307
      %v327 = vpop.xlane.xlu0 %326
      %v328 = vadd.f32 %v322, %v325
      %v329 = vadd.f32 %v323, %v327
      %vm330 = vcmask 7168
      %331 = vst.msk [vmem:[#allocation3] sm:$0xff] %vm330, %v328
      %332 = vst.msk [vmem:[#allocation3 + $0x8] sm:$0xff] %vm330, %v329
      %v333 = vld [vmem:[#allocation4] sm:$0xff]
      %v334 = vld [vmem:[#allocation4 + $0x8] sm:$0xff]
      %335 = vadd.xlane.f32.xlu0 %v312
      %v336 = vpop.xlane.xlu0 %335
      %337 = vadd.xlane.f32.xlu0 %v313
      %v338 = vpop.xlane.xlu0 %337
      %v339 = vadd.f32 %v333, %v336
      %v340 = vadd.f32 %v334, %v338
      %341 = vst.msk [vmem:[#allocation4] sm:$0xff] %vm330, %v339
      %342 = vst.msk [vmem:[#allocation4 + $0x8] sm:$0xff] %vm330, %v340
      %v343 = vld [vmem:[#allocation5] sm:$0xff]
      %v344 = vld [vmem:[#allocation5 + $0x8] sm:$0xff]
      %345 = vadd.xlane.f32.xlu0 %v310
      %v346 = vpop.xlane.xlu0 %345
      %347 = vadd.xlane.f32.xlu0 %v311
      %v348 = vpop.xlane.xlu0 %347
      %v349 = vadd.f32 %v343, %v346
      %v350 = vadd.f32 %v344, %v348
      %351 = vst.msk [vmem:[#allocation5] sm:$0xff] %vm330, %v349
      %352 = vst.msk [vmem:[#allocation5 + $0x8] sm:$0xff] %vm330, %v350
      %353 = vst.msk [vmem:[#allocation2] sm:$0xff] %vm330, %v290
      %354 = vst.msk [vmem:[#allocation2 + $0x8] sm:$0xff] %vm330, %v291
    $region33: #{tpu_custom_call.1} parent=1 // pred_fallthru
      _
    // Predicated region
    $region34: #{tpu_custom_call.1} parent=1 // pred_check
      %p355 = pneg %p32
    $region35: #{tpu_custom_call.1} parent=1 // pred_check_branch
      %357 = sbr.rel (%p355) target = $region37
    $region36: #{tpu_custom_call.1} parent=1 // pred_region
      %v358 = vld [vmem:[#allocation4] sm:$0xff]
      %v359 = vld [vmem:[#allocation4 + $0x8] sm:$0xff]
      %v360 = vld [vmem:[#allocation5] sm:$0xff]
      %v361 = vld [vmem:[#allocation5 + $0x8] sm:$0xff]
      %v362 = vrcp.pop %v360
      %v363 = vrcp.pop %v361
      %v364 = vmul.f32 %v358, %v362
      %v365 = vmul.f32 %v359, %v363
      %v366 = vld [vmem:[#allocation2] sm:$0xff]
      %v367 = vld [vmem:[#allocation2 + $0x8] sm:$0xff]
      %v368 = vld [vmem:[#allocation3] sm:$0xff]
      %v369 = vld [vmem:[#allocation3 + $0x8] sm:$0xff]
      %v370 = vlog2.pop %v368
      %v371 = vmul.f32 %v370, 0.6931472
      %v372 = vlog2.pop %v369
      %v373 = vmul.f32 %v372, 0.6931472
      %v374 = vadd.f32 %v366, %v371
      %v375 = vadd.f32 %v367, %v373
      %v376 = vsub.f32 %v364, %v374
      %v377 = vsub.f32 %v365, %v375
      %v378 = vmul.f32 %v376, -1.0
      %v379 = vmul.f32 %v377, -1.0
      %vm380 = vcmask 7168
      %381 = vst.msk [vmem:[%s4] sm:$0xff] %vm380, %v378
      %382 = vst.msk [vmem:[%s4 + $0x8] sm:$0xff] %vm380, %v379
    $region37: #{tpu_custom_call.1} parent=1 // pred_fallthru
      _
    // Predicated region
    $region38: #{tpu_custom_call.1} parent=1 // pred_check
      _
    $region39: #{tpu_custom_call.1} parent=1 // pred_check_branch
      %384 = sbr.rel (0) target = $region41
    $region40: #{tpu_custom_call.1} parent=1 // pred_region
      _
    $region41: #{tpu_custom_call.1} parent=1 // pred_fallthru
      _
    // Predicated region
    $region42: #{tpu_custom_call.1} parent=1 // pred_check
      _
    $region43: #{tpu_custom_call.1} parent=1 // pred_check_branch
      %386 = sbr.rel (0) target = $region45
    $region44: #{tpu_custom_call.1} parent=1 // pred_region
      _
    $region45: #{tpu_custom_call.1} parent=1 // pred_fallthru
      _
    %387 = vsyncpa [#allocation7], 1

</llo_original>
